<compile_context>
chip_gen: v7x
topology: tpu7x:2x2x1
jax: 0.10.0
libtpu: 0.0.40
codegen_flags: <defaults>
</compile_context>

<pallas_src>
import jax
import jax.numpy as jnp
from jax.experimental import pallas as pl
from jax.experimental.pallas import tpu as pltpu

HID_SIZE = 64
_PAD_HID = 128   # layer-1 output padded to a full lane tile -> regular transpose


def _round_up(x, m):
    return ((x + m - 1) // m) * m


def _critic_kernel(x_ref, w1p_ref, b1p_ref, w2tp_ref, b2c_ref, w3c_ref, b3_ref,
                   out_ref):
    # x tile: (TB, obs) f32, read once from HBM, no wrapper-side cast.
    x = x_ref[...]

    # Layer 1 (batch-major): (TB, obs) @ (obs, 128) -> (TB, 128).
    # Columns >= 64 of w1p/b1p are zero, so those columns of h1 are exactly 0.
    h1 = jnp.dot(x, w1p_ref[...], preferred_element_type=jnp.float32) + b1p_ref[...]
    h1 = jnp.maximum(h1, 0.0)

    # Single XLU transpose puts the tile feature-major; (TB,128)->(128,TB) is
    # the fully regular native-tile transpose shape.
    h1_t = jnp.transpose(h1)                                    # (128, TB)

    # Layer 2 (feature-major): (64, 128) @ (128, TB) -> (64, TB).
    # Padded K rows of h1_t are zero and padded K columns of w2tp are zero.
    h2_t = jnp.dot(w2tp_ref[...], h1_t,
                   preferred_element_type=jnp.float32) + b2c_ref[...]
    h2_t = jnp.maximum(h2_t, 0.0)

    # Layer 3 (64 -> 1) off the MXU: VPU broadcast-mul + XLU sublane reduce,
    # producing a lane-dense (1, TB) value row -> unmasked stores.
    v = jnp.sum(h2_t * w3c_ref[...], axis=0, keepdims=True) + b3_ref[...]
    out_ref[...] = v.astype(out_ref.dtype)


def model_critic_forward(x, params, *, tile_batch=None):
    """x: (B, obs) float32.  Returns (B, 1) float32 value estimates."""
    w1, b1, w2, b2, w3, b3 = params
    B, obs = x.shape
    pad = _PAD_HID - HID_SIZE

    # One-time tiny param reshapes/pads (resident in VMEM across grid steps).
    w1p = jnp.concatenate([w1, jnp.zeros((obs, pad), w1.dtype)], axis=1)          # (obs, 128)
    b1p = jnp.concatenate([b1.reshape(1, HID_SIZE),
                           jnp.zeros((1, pad), b1.dtype)], axis=1)                # (1, 128)
    w2tp = jnp.concatenate([w2.T, jnp.zeros((HID_SIZE, pad), w2.dtype)], axis=1)  # (64, 128)
    b2c = b2.reshape(HID_SIZE, 1)                                                 # (64, 1)
    w3c = w3.reshape(HID_SIZE, 1)                                                 # (64, 1)
    b3s = b3.reshape(1, 1)                                                        # (1, 1)

    # Batch tile: large (amortize ~0.35us/step, big DMAs), multiple of 128
    # because TB is the output lane dim, and capped so v7x's two TensorCores
    # both get grid steps when there is enough work.
    TB = 4096 if tile_batch is None else int(tile_batch)
    if B > 256:
        TB = min(TB, _round_up(-(-B // 2), 128))
    TB = max(1, min(TB, B))
    if TB < B:
        TB = _round_up(TB, 128)
        if TB >= B:
            TB = B                    # single full-array block is always legal
    grid = (pl.cdiv(B, TB),)

    const = lambda i: (0, 0)          # resident params: never re-fetched

    flops = 2 * B * (obs * _PAD_HID + _PAD_HID * HID_SIZE + HID_SIZE)
    bytes_accessed = (
        x.size * 4 + B * 4
        + (w1p.size + b1p.size + w2tp.size + b2c.size + w3c.size + b3s.size) * 4)

    out_row = pl.pallas_call(
        _critic_kernel,
        out_shape=jax.ShapeDtypeStruct((1, B), jnp.float32),
        grid=grid,
        in_specs=[
            pl.BlockSpec((TB, obs), lambda i: (i, 0)),   # x: pipelined over batch
            pl.BlockSpec(w1p.shape, const),
            pl.BlockSpec(b1p.shape, const),
            pl.BlockSpec(w2tp.shape, const),
            pl.BlockSpec(b2c.shape, const),
            pl.BlockSpec(w3c.shape, const),
            pl.BlockSpec(b3s.shape, const),
        ],
        out_specs=pl.BlockSpec((1, TB), lambda i: (0, i)),
        compiler_params=pltpu.CompilerParams(
            dimension_semantics=("parallel",),
            vmem_limit_bytes=32 * 1024 * 1024),
        cost_estimate=pl.CostEstimate(
            flops=flops, transcendentals=0, bytes_accessed=bytes_accessed),
    )(x, w1p, b1p, w2tp, b2c, w3c, b3s)

    # (1, B) -> (B, 1): same row-major data order, free metadata reshape.
    return out_row.reshape(B, 1)


def init_params(key, obs_size):
    """Mirrors nn.Linear default init (uniform +/- 1/sqrt(fan_in)).
    Weights stored as (in, out); forward is y = x @ W + b."""
    keys = jax.random.split(key, 6)

    def linear(kw, kb, fan_in, fan_out):
        bound = 1.0 / (fan_in ** 0.5)
        w = jax.random.uniform(kw, (fan_in, fan_out), jnp.float32, -bound, bound)
        b = jax.random.uniform(kb, (fan_out,), jnp.float32, -bound, bound)
        return w, b

    w1, b1 = linear(keys[0], keys[1], obs_size, HID_SIZE)
    w2, b2 = linear(keys[2], keys[3], HID_SIZE, HID_SIZE)
    w3, b3 = linear(keys[4], keys[5], HID_SIZE, 1)
    return (w1, b1, w2, b2, w3, b3)


def _reference_forward(x, params):
    """Pure-JAX f32 reference matching the PyTorch module semantics."""
    w1, b1, w2, b2, w3, b3 = params
    h1 = jnp.maximum(x @ w1 + b1, 0.0)
    h2 = jnp.maximum(h1 @ w2 + b2, 0.0)
    return h2 @ w3 + b3


if __name__ == "__main__":
    OBS_SIZE = 26   # HalfCheetahBulletEnv observation size
    key = jax.random.PRNGKey(0)
    kx1, kx2, kp = jax.random.split(key, 3)
    params = init_params(kp, OBS_SIZE)

    # Small batch: single grid step, full-array blocks.
    B1 = 8
    x1 = jax.random.normal(kx1, (B1, OBS_SIZE), jnp.float32)
    out1 = jax.block_until_ready(model_critic_forward(x1, params))
    ref1 = _reference_forward(x1, params)
    assert out1.shape == (B1, 1)
    assert jnp.allclose(out1, ref1, atol=5e-2, rtol=5e-2), (out1, ref1)

    # Multi-step grid with a partial tail tile (200 = 128 + 72), exercising the
    # pipelined x path and the lane-dense (1, TB) output writeback.
    B2 = 200
    x2 = jax.random.normal(kx2, (B2, OBS_SIZE), jnp.float32)
    out2 = jax.block_until_ready(model_critic_forward(x2, params, tile_batch=128))
    ref2 = _reference_forward(x2, params)
    assert out2.shape == (B2, 1)
    assert jnp.allclose(out2, ref2, atol=5e-2, rtol=5e-2), (out2, ref2)

    print("KERNEL_OK")
</pallas_src>

<mosaic_0001>
module attributes {stable_mosaic.version = 11 : i64} {
  func.func @_critic_kernel(%arg0: i32, %arg1: memref<8x26xf32, #tpu.memory_space<vmem>>, %arg2: memref<26x128xf32, #tpu.memory_space<vmem>>, %arg3: memref<1x128xf32, #tpu.memory_space<vmem>>, %arg4: memref<64x128xf32, #tpu.memory_space<vmem>>, %arg5: memref<64x1xf32, #tpu.memory_space<vmem>>, %arg6: memref<64x1xf32, #tpu.memory_space<vmem>>, %arg7: memref<1x1xf32, #tpu.memory_space<vmem>>, %arg8: memref<1x8xf32, #tpu.memory_space<vmem>>) attributes {dimension_semantics = [#tpu.dimension_semantics<parallel>], iteration_bounds = array<i64: 1>, scalar_prefetch = 0 : i64, scratch_operands = 0 : i64, tpu.core_type = #tpu.core_type<tc>, window_params = [{transform_indices = @transform_0, window_bounds = array<i64: 8, 26>}, {pipeline_mode = #tpu.pipeline_mode<synchronous>, transform_indices = @transform_1, window_bounds = array<i64: 26, 128>}, {pipeline_mode = #tpu.pipeline_mode<synchronous>, transform_indices = @transform_2, window_bounds = array<i64: 1, 128>}, {pipeline_mode = #tpu.pipeline_mode<synchronous>, transform_indices = @transform_3, window_bounds = array<i64: 64, 128>}, {pipeline_mode = #tpu.pipeline_mode<synchronous>, transform_indices = @transform_4, window_bounds = array<i64: 64, 1>}, {pipeline_mode = #tpu.pipeline_mode<synchronous>, transform_indices = @transform_5, window_bounds = array<i64: 64, 1>}, {pipeline_mode = #tpu.pipeline_mode<synchronous>, transform_indices = @transform_6, window_bounds = array<i64: 1, 1>}, {transform_indices = @transform_7, window_bounds = array<i64: 1, 8>}]} {
    %c0 = arith.constant 0 : index
    %c0_0 = arith.constant 0 : index
    %0 = vector.load %arg1[%c0, %c0_0] : memref<8x26xf32, #tpu.memory_space<vmem>>, vector<8x26xf32>
    %c0_1 = arith.constant 0 : index
    %c0_2 = arith.constant 0 : index
    %1 = vector.load %arg2[%c0_1, %c0_2] : memref<26x128xf32, #tpu.memory_space<vmem>>, vector<26x128xf32>
    %cst = arith.constant dense<0.000000e+00> : vector<8x128xf32>
    %2 = tpu.matmul %0, %1, %cst {dimension_numbers = #tpu.dot_dimension_numbers<[1], [0], [0], [1], [0, 0, 1, 1], [], []>} : vector<8x26xf32>, vector<26x128xf32>, vector<8x128xf32> -> vector<8x128xf32>
    %c0_3 = arith.constant 0 : index
    %c0_4 = arith.constant 0 : index
    %3 = vector.load %arg3[%c0_3, %c0_4] : memref<1x128xf32, #tpu.memory_space<vmem>>, vector<1x128xf32>
    %4 = vector.broadcast %3 : vector<1x128xf32> to vector<8x128xf32>
    %5 = arith.addf %2, %4 : vector<8x128xf32>
    %cst_5 = arith.constant 0.000000e+00 : f32
    %6 = vector.broadcast %cst_5 : f32 to vector<8x128xf32>
    %7 = arith.maximumf %5, %6 : vector<8x128xf32>
    %8 = tpu.transpose %7, [1, 0] : vector<8x128xf32> -> vector<128x8xf32>
    %c0_6 = arith.constant 0 : index
    %c0_7 = arith.constant 0 : index
    %9 = vector.load %arg4[%c0_6, %c0_7] : memref<64x128xf32, #tpu.memory_space<vmem>>, vector<64x128xf32>
    %cst_8 = arith.constant dense<0.000000e+00> : vector<64x8xf32>
    %10 = tpu.matmul %9, %8, %cst_8 {dimension_numbers = #tpu.dot_dimension_numbers<[1], [0], [0], [1], [0, 0, 1, 1], [], []>} : vector<64x128xf32>, vector<128x8xf32>, vector<64x8xf32> -> vector<64x8xf32>
    %c0_9 = arith.constant 0 : index
    %c0_10 = arith.constant 0 : index
    %11 = vector.load %arg5[%c0_9, %c0_10] : memref<64x1xf32, #tpu.memory_space<vmem>>, vector<64x1xf32>
    %12 = vector.broadcast %11 : vector<64x1xf32> to vector<64x8xf32>
    %13 = arith.addf %10, %12 : vector<64x8xf32>
    %cst_11 = arith.constant 0.000000e+00 : f32
    %14 = vector.broadcast %cst_11 : f32 to vector<64x8xf32>
    %15 = arith.maximumf %13, %14 : vector<64x8xf32>
    %c0_12 = arith.constant 0 : index
    %c0_13 = arith.constant 0 : index
    %16 = vector.load %arg6[%c0_12, %c0_13] : memref<64x1xf32, #tpu.memory_space<vmem>>, vector<64x1xf32>
    %17 = vector.broadcast %16 : vector<64x1xf32> to vector<64x8xf32>
    %18 = arith.mulf %15, %17 : vector<64x8xf32>
    %cst_14 = arith.constant dense<0.000000e+00> : vector<8xf32>
    %19 = vector.multi_reduction <add>, %18, %cst_14 [0] : vector<64x8xf32> to vector<8xf32>
    %20 = vector.shape_cast %19 : vector<8xf32> to vector<1x8xf32>
    %c0_15 = arith.constant 0 : index
    %c0_16 = arith.constant 0 : index
    %21 = vector.load %arg7[%c0_15, %c0_16] : memref<1x1xf32, #tpu.memory_space<vmem>>, vector<1x1xf32>
    %22 = vector.broadcast %21 : vector<1x1xf32> to vector<1x8xf32>
    %23 = arith.addf %20, %22 : vector<1x8xf32>
    %c0_17 = arith.constant 0 : index
    %c0_18 = arith.constant 0 : index
    %24 = vector.load %arg8[%c0_17, %c0_18] : memref<1x8xf32, #tpu.memory_space<vmem>>, vector<1x8xf32>
    tpu.vector_store %arg8[%c0_17, %c0_18], %23 {strides = array<i32>} : memref<1x8xf32, #tpu.memory_space<vmem>>, vector<1x8xf32>,
    return
  }
  func.func @transform_0(%arg0: i32) -> (i32, i32) {
    %c0_i32 = arith.constant 0 : i32
    %c0_i32_0 = arith.constant 0 : i32
    return %arg0, %c0_i32 : i32, i32
  }
  func.func @transform_1(%arg0: i32) -> (i32, i32) {
    %c0_i32 = arith.constant 0 : i32
    %c0_i32_0 = arith.constant 0 : i32
    %c0_i32_1 = arith.constant 0 : i32
    return %c0_i32, %c0_i32_0 : i32, i32
  }
  func.func @transform_2(%arg0: i32) -> (i32, i32) {
    %c0_i32 = arith.constant 0 : i32
    %c0_i32_0 = arith.constant 0 : i32
    %c0_i32_1 = arith.constant 0 : i32
    return %c0_i32, %c0_i32_0 : i32, i32
  }
  func.func @transform_3(%arg0: i32) -> (i32, i32) {
    %c0_i32 = arith.constant 0 : i32
    %c0_i32_0 = arith.constant 0 : i32
    %c0_i32_1 = arith.constant 0 : i32
    return %c0_i32, %c0_i32_0 : i32, i32
  }
  func.func @transform_4(%arg0: i32) -> (i32, i32) {
    %c0_i32 = arith.constant 0 : i32
    %c0_i32_0 = arith.constant 0 : i32
    %c0_i32_1 = arith.constant 0 : i32
    return %c0_i32, %c0_i32_0 : i32, i32
  }
  func.func @transform_5(%arg0: i32) -> (i32, i32) {
    %c0_i32 = arith.constant 0 : i32
    %c0_i32_0 = arith.constant 0 : i32
    %c0_i32_1 = arith.constant 0 : i32
    return %c0_i32, %c0_i32_0 : i32, i32
  }
  func.func @transform_6(%arg0: i32) -> (i32, i32) {
    %c0_i32 = arith.constant 0 : i32
    %c0_i32_0 = arith.constant 0 : i32
    %c0_i32_1 = arith.constant 0 : i32
    return %c0_i32, %c0_i32_0 : i32, i32
  }
  func.func @transform_7(%arg0: i32) -> (i32, i32) {
    %c0_i32 = arith.constant 0 : i32
    %c0_i32_0 = arith.constant 0 : i32
    return %c0_i32, %arg0 : i32, i32
  }
}

</mosaic_0001>

<llo_original>
// kernel: tpu_custom_call.1
$region0: #{tpu_custom_call.1}
  #allocation0 [shape = 'u32[]', space=smem, size = 0x4, offset = 0x4, fixed_abs, tag = 'smem constant byte address 0x4 - core index']
  #allocation1 [shape = 'u32[144,128]{1,0:T(1,128)}', space=vmem, size = 0x12000, scoped, tag = 'internal scratch']
  #allocation2 [shape = 'f32[1,1]{1,0:T(1,128)S(1)}', space=vmem, size = 0x200, scoped, tag = 'scoped memory for tpu_custom_call.1']
  %s0 = inlined_call_operand.vmem [shape: f32[8,26], index: 0, kind: input, shape index: {}]
  %s1 = inlined_call_operand.vmem [shape: f32[26,128], index: 1, kind: input, shape index: {}]
  %s2 = inlined_call_operand.vmem [shape: f32[1,128], index: 2, kind: input, shape index: {}]
  %s3 = inlined_call_operand.vmem [shape: f32[64,128], index: 3, kind: input, shape index: {}]
  %s4 = inlined_call_operand.vmem [shape: f32[64,1], index: 4, kind: input, shape index: {}]
  %s5 = inlined_call_operand.vmem [shape: f32[64,1], index: 5, kind: input, shape index: {}]
  %s6 = inlined_call_operand.<no memory space> [shape: f32[1,1], index: 6, kind: input, shape index: {}]
  %s7 = inlined_call_operand.hbm [shape: f32[1,8], index: 7, kind: output, shape index: {}]
  %s8 = sld [smem:[#allocation0]]
  $region38: #{tpu_custom_call.1} parent=0
    _
  %s10 = ssub.s32 1, %s8
  %s11 = scalar_select 0, %s10, %s8
  %v12 = vstv %s6
  %13 = vst [vmem:[#allocation2] sm:$0x1] %v12
  $region1: #{tpu_custom_call.1} parent=0
    #allocation3 [shape = 'u8[512]{0}', space=vmem, size = 0x400, scoped, tag = 'output window, operand 0, single buffered']
    #allocation4 [shape = 's32[1]{0}', space=sflag, size = 0x4, scoped, tag = 'scoped memory for tpu_custom_call.1']
    %14 = vsyncpa [#allocation4], 0
    // Predicated region
    $region2: #{tpu_custom_call.1} parent=1 // pred_check
      _
    $region3: #{tpu_custom_call.1} parent=1 // pred_check_branch
      %16 = sbr.rel (0) target = $region5
    $region4: #{tpu_custom_call.1} parent=1 // pred_region
      _
    $region5: #{tpu_custom_call.1} parent=1 // pred_fallthru
      _
    // Predicated region
    $region6: #{tpu_custom_call.1} parent=1 // pred_check
      _
    $region7: #{tpu_custom_call.1} parent=1 // pred_check_branch
      %18 = sbr.rel (0) target = $region9
    $region8: #{tpu_custom_call.1} parent=1 // pred_region
      _
    $region9: #{tpu_custom_call.1} parent=1 // pred_fallthru
      _
    // Predicated region
    $region10: #{tpu_custom_call.1} parent=1 // pred_check
      _
    $region11: #{tpu_custom_call.1} parent=1 // pred_check_branch
      %20 = sbr.rel (0) target = $region13
    $region12: #{tpu_custom_call.1} parent=1 // pred_region
      _
    $region13: #{tpu_custom_call.1} parent=1 // pred_fallthru
      _
    // Predicated region
    $region14: #{tpu_custom_call.1} parent=1 // pred_check
      _
    $region15: #{tpu_custom_call.1} parent=1 // pred_check_branch
      %22 = sbr.rel (0) target = $region17
    $region16: #{tpu_custom_call.1} parent=1 // pred_region
      _
    $region17: #{tpu_custom_call.1} parent=1 // pred_fallthru
      _
    // Predicated region
    $region18: #{tpu_custom_call.1} parent=1 // pred_check
      _
    $region19: #{tpu_custom_call.1} parent=1 // pred_check_branch
      %24 = sbr.rel (0) target = $region21
    $region20: #{tpu_custom_call.1} parent=1 // pred_region
      _
    $region21: #{tpu_custom_call.1} parent=1 // pred_fallthru
      _
    // Predicated region
    $region22: #{tpu_custom_call.1} parent=1 // pred_check
      _
    $region23: #{tpu_custom_call.1} parent=1 // pred_check_branch
      %26 = sbr.rel (0) target = $region25
    $region24: #{tpu_custom_call.1} parent=1 // pred_region
      _
    $region25: #{tpu_custom_call.1} parent=1 // pred_fallthru
      _
    // Predicated region
    $region26: #{tpu_custom_call.1} parent=1 // pred_check
      _
    $region27: #{tpu_custom_call.1} parent=1 // pred_check_branch
      %28 = sbr.rel (0) target = $region29
    $region28: #{tpu_custom_call.1} parent=1 // pred_region
      _
    $region29: #{tpu_custom_call.1} parent=1 // pred_fallthru
      _
    %v29 = vld [vmem:[%s0] sm:$0xff]
    %v30 = vld [vmem:[%s1] sm:$0xff]
    %v31 = vld [vmem:[%s1 + $0x8] sm:$0xff]
    %v32 = vld [vmem:[%s1 + $0x10] sm:$0xff]
    %v33 = vld [vmem:[%s1 + $0x18] sm:$0x3]
    %v34 = vld [vmem:[%s2] sm:$0x1]
    %v36 = vlaneseq
    %v37 = vshrl.u32 %v36, 7
    %v38 = vsub.s32 0, %v37
    %v39 = vrot.slane %v34, %v38
    %vm41 = vcmask 211968
    %v43 = vsel %vm41, %v29, 0
    %vm45 = vcmask 1041408
    %v47 = vsel %vm45, %v33, 0
    %49 = vmatprep.subr.mxu0 0.0
    %50 = vmatpush1.msra.mxu0 %v30
    %51 = vmatprep.subr.mxu0 0.0
    %52 = vmatpush1.msra.mxu0 %v31
    %53 = vmatprep.subr.mxu0 0.0
    %54 = vmatpush1.msra.mxu0 %v32
    %55 = vmatprep.subr.mxu0 0.0
    %56 = vmatpush1.msra.mxu0 %v47
    %57 = vmatprep.subr.mxu0 0.0
    %58 = vmatpush1.msra.mxu0 0.0
    %59 = vmatprep.subr.mxu0 0.0
    %60 = vmatpush1.msra.mxu0 0.0
    %61 = vmatprep.subr.mxu0 0.0
    %62 = vmatpush1.msra.mxu0 0.0
    %63 = vmatprep.subr.mxu0 0.0
    %64 = vmatpush1.msra.mxu0 0.0
    %65 = vmatprep.subr.mxu0 0.0
    %66 = vmatpush1.msra.mxu0 0.0
    %67 = vmatprep.subr.mxu0 0.0
    %68 = vmatpush1.msra.mxu0 0.0
    %69 = vmatprep.subr.mxu0 0.0
    %70 = vmatpush1.msra.mxu0 0.0
    %71 = vmatprep.subr.mxu0 0.0
    %72 = vmatpush1.msra.mxu0 0.0
    %73 = vmatprep.subr.mxu0 0.0
    %74 = vmatpush1.msra.mxu0 0.0
    %75 = vmatprep.subr.mxu0 0.0
    %76 = vmatpush1.msra.mxu0 0.0
    %77 = vmatprep.subr.mxu0 0.0
    %78 = vmatpush1.msra.mxu0 0.0
    %79 = vmatprep.subr.mxu0 0.0
    %80 = vmatpush1.msra.mxu0 0.0
    %81 = vmatprep.subr.mxu0 0.0
    %82 = vmatpush1.msra.mxu0 0.0
    %83 = vmatprep.subr.mxu0 0.0
    %84 = vmatpush1.msra.mxu0 0.0
    %85 = vmatprep.subr.mxu0 0.0
    %86 = vmatpush1.msra.mxu0 0.0
    %87 = vmatprep.subr.mxu0 0.0
    %88 = vmatpush1.msra.mxu0 0.0
    %89 = vmatprep.subr.mxu0 0.0
    %90 = vmatpush1.msra.mxu0 0.0
    %91 = vmatprep.subr.mxu0 0.0
    %92 = vmatpush1.msra.mxu0 0.0
    %93 = vmatprep.subr.mxu0 0.0
    %94 = vmatpush1.msra.mxu0 0.0
    %95 = vmatprep.subr.mxu0 0.0
    %96 = vmatpush1.msra.mxu0 0.0
    %97 = vmatprep.subr.mxu0 0.0
    %98 = vmatpush1.msra.mxu0 0.0
    %99 = vmatprep.subr.mxu0 0.0
    %100 = vmatpush1.msra.mxu0 0.0
    %101 = vmatprep.subr.mxu0 0.0
    %102 = vmatpush1.msra.mxu0 0.0
    %103 = vmatprep.subr.mxu0 0.0
    %104 = vmatpush1.msra.mxu0 0.0
    %105 = vmatprep.subr.mxu0 0.0
    %106 = vmatpush1.msra.mxu0 0.0
    %107 = vmatprep.subr.mxu0 0.0
    %108 = vmatpush1.msra.mxu0 0.0
    %109 = vmatprep.subr.mxu0 0.0
    %110 = vmatpush1.msra.mxu0 0.0
    %111 = vmatprep.subr.mxu0 0.0
    %112 = vmatpush1.msra.mxu0 0.0
    %113 = vmatprep.mubr.f32.mxu0 0.0
    %114 = vmatmul.mubr.f32.gmra.mrb[0].mxu0 %v43
    %v115 = vpop.f32.mrb[0].mxu0
    %v116 = vadd.f32 %v39, %v115
    %v117 = vpop.f32.mrb[0].mxu0
    %118 = vdwg.mxu0
    %v119 = vmax.f32 %v116, 0.0
    %v120 = vld [vmem:[%s3] sm:$0xff]
    %v121 = vld [vmem:[%s3 + $0x8] sm:$0xff]
    %v122 = vld [vmem:[%s3 + $0x10] sm:$0xff]
    %v123 = vld [vmem:[%s3 + $0x18] sm:$0xff]
    %v124 = vld [vmem:[%s3 + $0x20] sm:$0xff]
    %v125 = vld [vmem:[%s3 + $0x28] sm:$0xff]
    %v126 = vld [vmem:[%s3 + $0x30] sm:$0xff]
    %v127 = vld [vmem:[%s3 + $0x38] sm:$0xff]
    %v128 = vld [vmem:[%s4] sm:$0xff]
    %v129 = vld [vmem:[%s4 + $0x8] sm:$0xff]
    %v130 = vld [vmem:[%s4 + $0x10] sm:$0xff]
    %v131 = vld [vmem:[%s4 + $0x18] sm:$0xff]
    %v132 = vld [vmem:[%s4 + $0x20] sm:$0xff]
    %v133 = vld [vmem:[%s4 + $0x28] sm:$0xff]
    %v134 = vld [vmem:[%s4 + $0x30] sm:$0xff]
    %v135 = vld [vmem:[%s4 + $0x38] sm:$0xff]
    %137 = vset.pattern.permute.xlu0 0
    %138 = vperm.xlu0 %137, %v128
    %v139 = vpop.permute.xlu0 %138
    %142 = vset.pattern.permute.xlu0 0
    %143 = vperm.xlu0 %142, %v129
    %v144 = vpop.permute.xlu0 %143
    %147 = vset.pattern.permute.xlu0 0
    %148 = vperm.xlu0 %147, %v130
    %v149 = vpop.permute.xlu0 %148
    %152 = vset.pattern.permute.xlu0 0
    %153 = vperm.xlu0 %152, %v131
    %v154 = vpop.permute.xlu0 %153
    %157 = vset.pattern.permute.xlu0 0
    %158 = vperm.xlu0 %157, %v132
    %v159 = vpop.permute.xlu0 %158
    %162 = vset.pattern.permute.xlu0 0
    %163 = vperm.xlu0 %162, %v133
    %v164 = vpop.permute.xlu0 %163
    %167 = vset.pattern.permute.xlu0 0
    %168 = vperm.xlu0 %167, %v134
    %v169 = vpop.permute.xlu0 %168
    %172 = vset.pattern.permute.xlu0 0
    %173 = vperm.xlu0 %172, %v135
    %v174 = vpop.permute.xlu0 %173
    %176 = vmatprep.subr.mxu0 0.0
    %177 = vmatpush1.xpose.msra.mxu0 %v119
    %178 = vmatprep.subr.mxu0 0.0
    %179 = vmatpush1.xpose.msra.mxu0 0.0
    %180 = vmatprep.subr.mxu0 0.0
    %181 = vmatpush1.xpose.msra.mxu0 0.0
    %182 = vmatprep.subr.mxu0 0.0
    %183 = vmatpush1.xpose.msra.mxu0 0.0
    %184 = vmatprep.subr.mxu0 0.0
    %185 = vmatpush1.xpose.msra.mxu0 0.0
    %186 = vmatprep.subr.mxu0 0.0
    %187 = vmatpush1.xpose.msra.mxu0 0.0
    %188 = vmatprep.subr.mxu0 0.0
    %189 = vmatpush1.xpose.msra.mxu0 0.0
    %190 = vmatprep.subr.mxu0 0.0
    %191 = vmatpush1.xpose.msra.mxu0 0.0
    %192 = vmatprep.subr.mxu0 0.0
    %193 = vmatpush1.xpose.msra.mxu0 0.0
    %194 = vmatprep.subr.mxu0 0.0
    %195 = vmatpush1.xpose.msra.mxu0 0.0
    %196 = vmatprep.subr.mxu0 0.0
    %197 = vmatpush1.xpose.msra.mxu0 0.0
    %198 = vmatprep.subr.mxu0 0.0
    %199 = vmatpush1.xpose.msra.mxu0 0.0
    %200 = vmatprep.subr.mxu0 0.0
    %201 = vmatpush1.xpose.msra.mxu0 0.0
    %202 = vmatprep.subr.mxu0 0.0
    %203 = vmatpush1.xpose.msra.mxu0 0.0
    %204 = vmatprep.subr.mxu0 0.0
    %205 = vmatpush1.xpose.msra.mxu0 0.0
    %206 = vmatprep.subr.mxu0 0.0
    %207 = vmatpush1.xpose.msra.mxu0 0.0
    %208 = vmatprep.subr.mxu0 0.0
    %209 = vmatpush1.xpose.msra.mxu0 0.0
    %210 = vmatprep.subr.mxu0 0.0
    %211 = vmatpush1.xpose.msra.mxu0 0.0
    %212 = vmatprep.subr.mxu0 0.0
    %213 = vmatpush1.xpose.msra.mxu0 0.0
    %214 = vmatprep.subr.mxu0 0.0
    %215 = vmatpush1.xpose.msra.mxu0 0.0
    %216 = vmatprep.subr.mxu0 0.0
    %217 = vmatpush1.xpose.msra.mxu0 0.0
    %218 = vmatprep.subr.mxu0 0.0
    %219 = vmatpush1.xpose.msra.mxu0 0.0
    %220 = vmatprep.subr.mxu0 0.0
    %221 = vmatpush1.xpose.msra.mxu0 0.0
    %222 = vmatprep.subr.mxu0 0.0
    %223 = vmatpush1.xpose.msra.mxu0 0.0
    %224 = vmatprep.subr.mxu0 0.0
    %225 = vmatpush1.xpose.msra.mxu0 0.0
    %226 = vmatprep.subr.mxu0 0.0
    %227 = vmatpush1.xpose.msra.mxu0 0.0
    %228 = vmatprep.subr.mxu0 0.0
    %229 = vmatpush1.xpose.msra.mxu0 0.0
    %230 = vmatprep.subr.mxu0 0.0
    %231 = vmatpush1.xpose.msra.mxu0 0.0
    %232 = vmatprep.subr.mxu0 0.0
    %233 = vmatpush1.xpose.msra.mxu0 0.0
    %234 = vmatprep.subr.mxu0 0.0
    %235 = vmatpush1.xpose.msra.mxu0 0.0
    %236 = vmatprep.subr.mxu0 0.0
    %237 = vmatpush1.xpose.msra.mxu0 0.0
    %238 = vmatprep.subr.mxu0 0.0
    %239 = vmatpush1.xpose.msra.mxu0 0.0
    %240 = vmatprep.mubr.f32.mxu0 0.0
    %241 = vmatmul.mubr.f32.gmra.mrb[0].mxu0 %v120
    %v242 = vpop.f32.mrb[0].mxu0
    %v243 = vadd.f32 %v139, %v242
    %v244 = vpop.f32.mrb[0].mxu0
    %245 = vmatprep.mubr.f32.mxu0 0.0
    %246 = vmatmul.mubr.f32.gmra.mrb[0].mxu0 %v121
    %v247 = vpop.f32.mrb[0].mxu0
    %v248 = vadd.f32 %v144, %v247
    %v249 = vpop.f32.mrb[0].mxu0
    %250 = vmatprep.mubr.f32.mxu0 0.0
    %251 = vmatmul.mubr.f32.gmra.mrb[0].mxu0 %v122
    %v252 = vpop.f32.mrb[0].mxu0
    %v253 = vadd.f32 %v149, %v252
    %v254 = vpop.f32.mrb[0].mxu0
    %255 = vmatprep.mubr.f32.mxu0 0.0
    %256 = vmatmul.mubr.f32.gmra.mrb[0].mxu0 %v123
    %v257 = vpop.f32.mrb[0].mxu0
    %v258 = vadd.f32 %v154, %v257
    %v259 = vpop.f32.mrb[0].mxu0
    %260 = vmatprep.mubr.f32.mxu0 0.0
    %261 = vmatmul.mubr.f32.gmra.mrb[0].mxu0 %v124
    %v262 = vpop.f32.mrb[0].mxu0
    %v263 = vadd.f32 %v159, %v262
    %v264 = vpop.f32.mrb[0].mxu0
    %265 = vmatprep.mubr.f32.mxu0 0.0
    %266 = vmatmul.mubr.f32.gmra.mrb[0].mxu0 %v125
    %v267 = vpop.f32.mrb[0].mxu0
    %v268 = vadd.f32 %v164, %v267
    %v269 = vpop.f32.mrb[0].mxu0
    %270 = vmatprep.mubr.f32.mxu0 0.0
    %271 = vmatmul.mubr.f32.gmra.mrb[0].mxu0 %v126
    %v272 = vpop.f32.mrb[0].mxu0
    %v273 = vadd.f32 %v169, %v272
    %v274 = vpop.f32.mrb[0].mxu0
    %275 = vmatprep.mubr.f32.mxu0 0.0
    %276 = vmatmul.mubr.f32.gmra.mrb[0].mxu0 %v127
    %v277 = vpop.f32.mrb[0].mxu0
    %v278 = vadd.f32 %v174, %v277
    %v279 = vpop.f32.mrb[0].mxu0
    %280 = vdwg.mxu0
    %v281 = vmax.f32 %v243, 0.0
    %v282 = vmax.f32 %v248, 0.0
    %v283 = vmax.f32 %v253, 0.0
    %v284 = vmax.f32 %v258, 0.0
    %v285 = vmax.f32 %v263, 0.0
    %v286 = vmax.f32 %v268, 0.0
    %v287 = vmax.f32 %v273, 0.0
    %v288 = vmax.f32 %v278, 0.0
    %v289 = vld [vmem:[%s5] sm:$0xff]
    %v290 = vld [vmem:[%s5 + $0x8] sm:$0xff]
    %v291 = vld [vmem:[%s5 + $0x10] sm:$0xff]
    %v292 = vld [vmem:[%s5 + $0x18] sm:$0xff]
    %v293 = vld [vmem:[%s5 + $0x20] sm:$0xff]
    %v294 = vld [vmem:[%s5 + $0x28] sm:$0xff]
    %v295 = vld [vmem:[%s5 + $0x30] sm:$0xff]
    %v296 = vld [vmem:[%s5 + $0x38] sm:$0xff]
    %298 = vset.pattern.permute.xlu0 0
    %299 = vperm.xlu0 %298, %v289
    %v300 = vpop.permute.xlu0 %299
    %303 = vset.pattern.permute.xlu0 0
    %304 = vperm.xlu0 %303, %v290
    %v305 = vpop.permute.xlu0 %304
    %308 = vset.pattern.permute.xlu0 0
    %309 = vperm.xlu0 %308, %v291
    %v310 = vpop.permute.xlu0 %309
    %313 = vset.pattern.permute.xlu0 0
    %314 = vperm.xlu0 %313, %v292
    %v315 = vpop.permute.xlu0 %314
    %318 = vset.pattern.permute.xlu0 0
    %319 = vperm.xlu0 %318, %v293
    %v320 = vpop.permute.xlu0 %319
    %323 = vset.pattern.permute.xlu0 0
    %324 = vperm.xlu0 %323, %v294
    %v325 = vpop.permute.xlu0 %324
    %328 = vset.pattern.permute.xlu0 0
    %329 = vperm.xlu0 %328, %v295
    %v330 = vpop.permute.xlu0 %329
    %333 = vset.pattern.permute.xlu0 0
    %334 = vperm.xlu0 %333, %v296
    %v335 = vpop.permute.xlu0 %334
    %v337 = vmul.f32 %v281, %v300
    %v338 = vmul.f32 %v282, %v305
    %v339 = vmul.f32 %v283, %v310
    %v340 = vmul.f32 %v284, %v315
    %v341 = vmul.f32 %v285, %v320
    %v342 = vmul.f32 %v286, %v325
    %v343 = vmul.f32 %v287, %v330
    %v344 = vmul.f32 %v288, %v335
    %vm345 = vcmask 64512
    %v346 = vsel %vm345, %v337, 0.0
    %v347 = vsel %vm345, %v338, 0.0
    %v348 = vadd.f32 %v346, %v347
    %v349 = vsel %vm345, %v339, 0.0
    %v350 = vadd.f32 %v348, %v349
    %v351 = vsel %vm345, %v340, 0.0
    %v352 = vadd.f32 %v350, %v351
    %v353 = vsel %vm345, %v341, 0.0
    %v354 = vadd.f32 %v352, %v353
    %v355 = vsel %vm345, %v342, 0.0
    %v356 = vadd.f32 %v354, %v355
    %v357 = vsel %vm345, %v343, 0.0
    %v358 = vadd.f32 %v356, %v357
    %v359 = vsel %vm345, %v344, 0.0
    %v360 = vadd.f32 %v358, %v359
    %v361 = vrot.slane %v360, 4
    %v362 = vadd.f32 %v360, %v361
    %v363 = vrot.slane %v362, 2
    %v364 = vadd.f32 %v362, %v363
    %v365 = vrot.slane %v364, 1
    %v366 = vadd.f32 %v364, %v365
    %v367 = vld [vmem:[#allocation2] sm:$0x1]
    %369 = vset.pattern.permute.xlu0 0
    %370 = vperm.xlu0 %369, %v367
    %v371 = vpop.permute.xlu0 %370
    %v373 = vlaneseq
    %v374 = vshrl.u32 %v373, 7
    %v375 = vsub.s32 0, %v374
    %v376 = vrot.slane %v371, %v375
    %v377 = vadd.f32 %v366, %v376
    %vm378 = vcmask 57344
    %379 = vst.msk [vmem:[#allocation3] sm:$0x1] %vm378, %v377
    // Predicated region
    $region30: #{tpu_custom_call.1} parent=1 // pred_check
      _
    $region31: #{tpu_custom_call.1} parent=1 // pred_check_branch
      %381 = sbr.rel (0) target = $region33
    $region32: #{tpu_custom_call.1} parent=1 // pred_region
      %s383 = ssub.s32 16, 16
      %384 = vsyncadd [#allocation4], %s383
      %s386 = sshll.u32 [#allocation3], 4
      %s387 = int_to_ptr.vmem [resolvable:$true] %s386
      %389 = dma.vmem_to_hbm [thread:$0]  %s387, 16, %s7, [#allocation4]
    $region33: #{tpu_custom_call.1} parent=1 // pred_fallthru
      _
    // Predicated region
    $region34: #{tpu_custom_call.1} parent=1 // pred_check
      _
    $region35: #{tpu_custom_call.1} parent=1 // pred_check_branch
      %391 = sbr.rel (0) target = $region37
    $region36: #{tpu_custom_call.1} parent=1 // pred_region
      %392 = dma.done [#allocation4], 16
    $region37: #{tpu_custom_call.1} parent=1 // pred_fallthru
      _
    %393 = vsyncpa [#allocation4], 1

</llo_original>
